<compile_context>
chip_gen: v5e
topology: v5e:2x2
jax: 0.10.0
libtpu: 0.0.40
codegen_flags: <defaults>
</compile_context>

<pallas_src>
import functools

import jax
import jax.numpy as jnp
from jax.experimental import pallas as pl
from jax.experimental.pallas import tpu as pltpu

HIDDEN = 256
SUBLANE_BF16 = 16      # bf16 sublane tile -> batch tile must be a multiple of 16
TB_MAX = 2048          # cap on rows per grid step (keeps VMEM ~8 MiB worst case)


def _round_up(n, m):
    return ((n + m - 1) // m) * m


def _choose_batch_tiling(B):
    """Pick (TB, B_pad, n_tiles).

    Rows are padded only to the bf16 sublane tile (16).  For non-tiny batches
    we force an even number of tiles (>= 2) so v7x's two TensorCores split the
    work, each tile capped at TB_MAX, with minimal last-tile waste.
    """
    B16 = _round_up(max(B, 1), SUBLANE_BF16)
    if B16 <= 2 * SUBLANE_BF16:
        # Tiny batch: one grid step, no point splitting across cores.
        return B16, B16, 1
    n_tiles = max(2, 2 * (-(-B16 // (2 * TB_MAX))))   # even, ceil
    TB = _round_up(-(-B16 // n_tiles), SUBLANE_BF16)
    B_pad = _round_up(B16, TB)
    return TB, B_pad, B_pad // TB


def _actor_kernel(max_action,
                  x_ref,
                  w1_ref, b1_ref,
                  w2_ref, b2_ref,
                  w3_ref, b3_ref,
                  w4_ref, b4_ref,
                  out_ref):
    # fc1 + relu  (bf16 MXU feed, f32 accumulate, f32 elementwise)
    h = jnp.dot(x_ref[...], w1_ref[...], preferred_element_type=jnp.float32)
    h = jnp.maximum(h + b1_ref[...], 0.0)
    # fc2 + relu
    h = jnp.dot(h.astype(jnp.bfloat16), w2_ref[...],
                preferred_element_type=jnp.float32)
    h = jnp.maximum(h + b2_ref[...], 0.0)
    # fc3 + relu
    h = jnp.dot(h.astype(jnp.bfloat16), w3_ref[...],
                preferred_element_type=jnp.float32)
    h = jnp.maximum(h + b3_ref[...], 0.0)
    # action head: max_action * tanh(fc4)
    a = jnp.dot(h.astype(jnp.bfloat16), w4_ref[...],
                preferred_element_type=jnp.float32)
    a = a + b4_ref[...]
    out_ref[...] = (max_action * jnp.tanh(a)).astype(out_ref.dtype)


def prepare_params(params):
    """One-time weight prep, hoisted out of the per-call hot path:
    bf16 weights (MXU feed), f32 biases.  No padding is needed because the
    kernel uses the true inp/oup dims."""
    prepped = {}
    for i in range(1, 5):
        prepped[f"w{i}"] = params[f"w{i}"].astype(jnp.bfloat16)
        prepped[f"b{i}"] = params[f"b{i}"].astype(jnp.float32)
    return prepped


def actor_forward(x, prepped, max_action):
    """x: [B, inp_dim] float32.  prepped: output of prepare_params.
    Returns [B, oup_dim] float32."""
    B, inp_dim = x.shape
    oup_dim = prepped["w4"].shape[1]

    TB, B_pad, n_tiles = _choose_batch_tiling(B)

    # bf16 input staging; only sublane-level row padding (and only when needed).
    x_b = x.astype(jnp.bfloat16)
    if B_pad != B:
        x_b = jnp.zeros((B_pad, inp_dim), jnp.bfloat16).at[:B].set(x_b)

    # --- cost estimate ------------------------------------------------------
    flops = 2 * B_pad * (inp_dim * HIDDEN + 2 * HIDDEN * HIDDEN + HIDDEN * oup_dim)
    transcendentals = B_pad * oup_dim
    bytes_accessed = (
        B_pad * inp_dim * 2 + B_pad * oup_dim * 4                      # x in (bf16), out (f32)
        + sum(prepped[f"w{i}"].size for i in range(1, 5)) * 2          # bf16 weights
        + sum(prepped[f"b{i}"].size for i in range(1, 5)) * 4)         # f32 biases

    kernel = functools.partial(_actor_kernel, float(max_action))

    # Weights / biases: constant block index -> stay resident in VMEM, no
    # re-DMA across grid steps.
    const = lambda i: (0, 0)

    out = pl.pallas_call(
        kernel,
        out_shape=jax.ShapeDtypeStruct((B_pad, oup_dim), jnp.float32),
        grid_spec=pltpu.PrefetchScalarGridSpec(
            num_scalar_prefetch=0,
            grid=(n_tiles,),
            in_specs=[
                # x: tiled along the batch axis, true last dim (== array dim)
                pl.BlockSpec((TB, inp_dim), lambda i: (i, 0)),
                pl.BlockSpec((inp_dim, HIDDEN), const),
                pl.BlockSpec((1, HIDDEN), const),
                pl.BlockSpec((HIDDEN, HIDDEN), const),
                pl.BlockSpec((1, HIDDEN), const),
                pl.BlockSpec((HIDDEN, HIDDEN), const),
                pl.BlockSpec((1, HIDDEN), const),
                pl.BlockSpec((HIDDEN, oup_dim), const),
                pl.BlockSpec((1, oup_dim), const),
            ],
            out_specs=pl.BlockSpec((TB, oup_dim), lambda i: (i, 0)),
        ),
        compiler_params=pltpu.CompilerParams(
            dimension_semantics=("parallel",),
            vmem_limit_bytes=32 * 1024 * 1024),
        cost_estimate=pl.CostEstimate(
            flops=flops,
            transcendentals=transcendentals,
            bytes_accessed=bytes_accessed),
    )(x_b,
      prepped["w1"], prepped["b1"],
      prepped["w2"], prepped["b2"],
      prepped["w3"], prepped["b3"],
      prepped["w4"], prepped["b4"])

    if B_pad != B:
        out = out[:B]
    return out


def init_params(key, inp_dim, oup_dim):
    """Deterministic init mimicking nn.Linear's U(-1/sqrt(fan_in), 1/sqrt(fan_in))."""
    dims = [(inp_dim, HIDDEN), (HIDDEN, HIDDEN), (HIDDEN, HIDDEN), (HIDDEN, oup_dim)]
    params = {}
    keys = jax.random.split(key, 2 * len(dims))
    for i, (fan_in, fan_out) in enumerate(dims):
        bound = 1.0 / (fan_in ** 0.5)
        w = jax.random.uniform(keys[2 * i], (fan_in, fan_out),
                               minval=-bound, maxval=bound, dtype=jnp.float32)
        b = jax.random.uniform(keys[2 * i + 1], (1, fan_out),
                               minval=-bound, maxval=bound, dtype=jnp.float32)
        params[f"w{i + 1}"] = w
        params[f"b{i + 1}"] = b
    return params


def actor_ref(x, params, max_action):
    """Pure-JAX reference matching the kernel's numerics (bf16 MXU feeds,
    f32 accumulation, f32 elementwise)."""
    def dot_bf16(a, w):
        return jnp.dot(a.astype(jnp.bfloat16), w.astype(jnp.bfloat16),
                       preferred_element_type=jnp.float32)
    h = jnp.maximum(dot_bf16(x, params["w1"]) + params["b1"], 0.0)
    h = jnp.maximum(dot_bf16(h, params["w2"]) + params["b2"], 0.0)
    h = jnp.maximum(dot_bf16(h, params["w3"]) + params["b3"], 0.0)
    return max_action * jnp.tanh(dot_bf16(h, params["w4"]) + params["b4"])


def actor_ref_f32(x, params, max_action):
    """Full-precision reference (sanity check with looser tolerance)."""
    h = jnp.maximum(x @ params["w1"] + params["b1"], 0.0)
    h = jnp.maximum(h @ params["w2"] + params["b2"], 0.0)
    h = jnp.maximum(h @ params["w3"] + params["b3"], 0.0)
    return max_action * jnp.tanh(h @ params["w4"] + params["b4"])


if __name__ == "__main__":
    key = jax.random.PRNGKey(0)
    k_x, k_p = jax.random.split(key)

    batch = 2
    inp_dim = 16     # e.g. observation + goal dim
    oup_dim = 8      # action dim
    max_action = 1.0

    x = jax.random.normal(k_x, (batch, inp_dim), dtype=jnp.float32)
    params = init_params(k_p, inp_dim, oup_dim)

    prepped = prepare_params(params)          # one-time, off the hot path
    out = actor_forward(x, prepped, max_action)
    out = jax.block_until_ready(out)

    ref = actor_ref(x, params, max_action)
    ref_f32 = actor_ref_f32(x, params, max_action)

    assert out.shape == (batch, oup_dim)
    assert jnp.allclose(out, ref, atol=2e-3, rtol=2e-3), \
        f"mismatch vs bf16 reference: {jnp.max(jnp.abs(out - ref))}"
    assert jnp.allclose(out, ref_f32, atol=5e-2, rtol=5e-2), \
        f"mismatch vs f32 reference: {jnp.max(jnp.abs(out - ref_f32))}"

    print("KERNEL_OK")
</pallas_src>

<mosaic_0001>
module attributes {stable_mosaic.version = 11 : i64} {
  func.func @_actor_kernel(%arg0: i32, %arg1: memref<16x16xbf16, #tpu.memory_space<vmem>>, %arg2: memref<16x256xbf16, #tpu.memory_space<vmem>>, %arg3: memref<1x256xf32, #tpu.memory_space<vmem>>, %arg4: memref<256x256xbf16, #tpu.memory_space<vmem>>, %arg5: memref<1x256xf32, #tpu.memory_space<vmem>>, %arg6: memref<256x256xbf16, #tpu.memory_space<vmem>>, %arg7: memref<1x256xf32, #tpu.memory_space<vmem>>, %arg8: memref<256x8xbf16, #tpu.memory_space<vmem>>, %arg9: memref<1x8xf32, #tpu.memory_space<vmem>>, %arg10: memref<16x8xf32, #tpu.memory_space<vmem>>) attributes {dimension_semantics = [#tpu.dimension_semantics<parallel>], iteration_bounds = array<i64: 1>, scalar_prefetch = 0 : i64, scratch_operands = 0 : i64, tpu.core_type = #tpu.core_type<tc>, window_params = [{transform_indices = @transform_0, window_bounds = array<i64: 16, 16>}, {pipeline_mode = #tpu.pipeline_mode<synchronous>, transform_indices = @transform_1, window_bounds = array<i64: 16, 256>}, {pipeline_mode = #tpu.pipeline_mode<synchronous>, transform_indices = @transform_2, window_bounds = array<i64: 1, 256>}, {pipeline_mode = #tpu.pipeline_mode<synchronous>, transform_indices = @transform_3, window_bounds = array<i64: 256, 256>}, {pipeline_mode = #tpu.pipeline_mode<synchronous>, transform_indices = @transform_4, window_bounds = array<i64: 1, 256>}, {pipeline_mode = #tpu.pipeline_mode<synchronous>, transform_indices = @transform_5, window_bounds = array<i64: 256, 256>}, {pipeline_mode = #tpu.pipeline_mode<synchronous>, transform_indices = @transform_6, window_bounds = array<i64: 1, 256>}, {pipeline_mode = #tpu.pipeline_mode<synchronous>, transform_indices = @transform_7, window_bounds = array<i64: 256, 8>}, {pipeline_mode = #tpu.pipeline_mode<synchronous>, transform_indices = @transform_8, window_bounds = array<i64: 1, 8>}, {transform_indices = @transform_9, window_bounds = array<i64: 16, 8>}]} {
    %c0 = arith.constant 0 : index
    %c0_0 = arith.constant 0 : index
    %0 = vector.load %arg1[%c0, %c0_0] : memref<16x16xbf16, #tpu.memory_space<vmem>>, vector<16x16xbf16>
    %c0_1 = arith.constant 0 : index
    %c0_2 = arith.constant 0 : index
    %1 = vector.load %arg2[%c0_1, %c0_2] : memref<16x256xbf16, #tpu.memory_space<vmem>>, vector<16x256xbf16>
    %cst = arith.constant dense<0.000000e+00> : vector<16x256xf32>
    %2 = tpu.matmul %0, %1, %cst {dimension_numbers = #tpu.dot_dimension_numbers<[1], [0], [0], [1], [0, 0, 1, 1], [], []>} : vector<16x16xbf16>, vector<16x256xbf16>, vector<16x256xf32> -> vector<16x256xf32>
    %c0_3 = arith.constant 0 : index
    %c0_4 = arith.constant 0 : index
    %3 = vector.load %arg3[%c0_3, %c0_4] : memref<1x256xf32, #tpu.memory_space<vmem>>, vector<1x256xf32>
    %4 = vector.broadcast %3 : vector<1x256xf32> to vector<16x256xf32>
    %5 = arith.addf %2, %4 : vector<16x256xf32>
    %cst_5 = arith.constant 0.000000e+00 : f32
    %6 = vector.broadcast %cst_5 : f32 to vector<16x256xf32>
    %7 = arith.maximumf %5, %6 : vector<16x256xf32>
    %8 = arith.truncf %7 : vector<16x256xf32> to vector<16x256xbf16>
    %c0_6 = arith.constant 0 : index
    %c0_7 = arith.constant 0 : index
    %9 = vector.load %arg4[%c0_6, %c0_7] : memref<256x256xbf16, #tpu.memory_space<vmem>>, vector<256x256xbf16>
    %cst_8 = arith.constant dense<0.000000e+00> : vector<16x256xf32>
    %10 = tpu.matmul %8, %9, %cst_8 {dimension_numbers = #tpu.dot_dimension_numbers<[1], [0], [0], [1], [0, 0, 1, 1], [], []>} : vector<16x256xbf16>, vector<256x256xbf16>, vector<16x256xf32> -> vector<16x256xf32>
    %c0_9 = arith.constant 0 : index
    %c0_10 = arith.constant 0 : index
    %11 = vector.load %arg5[%c0_9, %c0_10] : memref<1x256xf32, #tpu.memory_space<vmem>>, vector<1x256xf32>
    %12 = vector.broadcast %11 : vector<1x256xf32> to vector<16x256xf32>
    %13 = arith.addf %10, %12 : vector<16x256xf32>
    %cst_11 = arith.constant 0.000000e+00 : f32
    %14 = vector.broadcast %cst_11 : f32 to vector<16x256xf32>
    %15 = arith.maximumf %13, %14 : vector<16x256xf32>
    %16 = arith.truncf %15 : vector<16x256xf32> to vector<16x256xbf16>
    %c0_12 = arith.constant 0 : index
    %c0_13 = arith.constant 0 : index
    %17 = vector.load %arg6[%c0_12, %c0_13] : memref<256x256xbf16, #tpu.memory_space<vmem>>, vector<256x256xbf16>
    %cst_14 = arith.constant dense<0.000000e+00> : vector<16x256xf32>
    %18 = tpu.matmul %16, %17, %cst_14 {dimension_numbers = #tpu.dot_dimension_numbers<[1], [0], [0], [1], [0, 0, 1, 1], [], []>} : vector<16x256xbf16>, vector<256x256xbf16>, vector<16x256xf32> -> vector<16x256xf32>
    %c0_15 = arith.constant 0 : index
    %c0_16 = arith.constant 0 : index
    %19 = vector.load %arg7[%c0_15, %c0_16] : memref<1x256xf32, #tpu.memory_space<vmem>>, vector<1x256xf32>
    %20 = vector.broadcast %19 : vector<1x256xf32> to vector<16x256xf32>
    %21 = arith.addf %18, %20 : vector<16x256xf32>
    %cst_17 = arith.constant 0.000000e+00 : f32
    %22 = vector.broadcast %cst_17 : f32 to vector<16x256xf32>
    %23 = arith.maximumf %21, %22 : vector<16x256xf32>
    %24 = arith.truncf %23 : vector<16x256xf32> to vector<16x256xbf16>
    %c0_18 = arith.constant 0 : index
    %c0_19 = arith.constant 0 : index
    %25 = vector.load %arg8[%c0_18, %c0_19] : memref<256x8xbf16, #tpu.memory_space<vmem>>, vector<256x8xbf16>
    %cst_20 = arith.constant dense<0.000000e+00> : vector<16x8xf32>
    %26 = tpu.matmul %24, %25, %cst_20 {dimension_numbers = #tpu.dot_dimension_numbers<[1], [0], [0], [1], [0, 0, 1, 1], [], []>} : vector<16x256xbf16>, vector<256x8xbf16>, vector<16x8xf32> -> vector<16x8xf32>
    %c0_21 = arith.constant 0 : index
    %c0_22 = arith.constant 0 : index
    %27 = vector.load %arg9[%c0_21, %c0_22] : memref<1x8xf32, #tpu.memory_space<vmem>>, vector<1x8xf32>
    %28 = vector.broadcast %27 : vector<1x8xf32> to vector<16x8xf32>
    %29 = arith.addf %26, %28 : vector<16x8xf32>
    %30 = math.tanh %29 : vector<16x8xf32>
    %cst_23 = arith.constant 1.000000e+00 : f32
    %31 = vector.broadcast %cst_23 : f32 to vector<16x8xf32>
    %32 = arith.mulf %31, %30 : vector<16x8xf32>
    %c0_24 = arith.constant 0 : index
    %c0_25 = arith.constant 0 : index
    %33 = vector.load %arg10[%c0_24, %c0_25] : memref<16x8xf32, #tpu.memory_space<vmem>>, vector<16x8xf32>
    tpu.vector_store %arg10[%c0_24, %c0_25], %32 {strides = array<i32>} : memref<16x8xf32, #tpu.memory_space<vmem>>, vector<16x8xf32>,
    return
  }
  func.func @transform_0(%arg0: i32) -> (i32, i32) {
    %c0_i32 = arith.constant 0 : i32
    %c0_i32_0 = arith.constant 0 : i32
    return %arg0, %c0_i32 : i32, i32
  }
  func.func @transform_1(%arg0: i32) -> (i32, i32) {
    %c0_i32 = arith.constant 0 : i32
    %c0_i32_0 = arith.constant 0 : i32
    %c0_i32_1 = arith.constant 0 : i32
    return %c0_i32, %c0_i32_0 : i32, i32
  }
  func.func @transform_2(%arg0: i32) -> (i32, i32) {
    %c0_i32 = arith.constant 0 : i32
    %c0_i32_0 = arith.constant 0 : i32
    %c0_i32_1 = arith.constant 0 : i32
    return %c0_i32, %c0_i32_0 : i32, i32
  }
  func.func @transform_3(%arg0: i32) -> (i32, i32) {
    %c0_i32 = arith.constant 0 : i32
    %c0_i32_0 = arith.constant 0 : i32
    %c0_i32_1 = arith.constant 0 : i32
    return %c0_i32, %c0_i32_0 : i32, i32
  }
  func.func @transform_4(%arg0: i32) -> (i32, i32) {
    %c0_i32 = arith.constant 0 : i32
    %c0_i32_0 = arith.constant 0 : i32
    %c0_i32_1 = arith.constant 0 : i32
    return %c0_i32, %c0_i32_0 : i32, i32
  }
  func.func @transform_5(%arg0: i32) -> (i32, i32) {
    %c0_i32 = arith.constant 0 : i32
    %c0_i32_0 = arith.constant 0 : i32
    %c0_i32_1 = arith.constant 0 : i32
    return %c0_i32, %c0_i32_0 : i32, i32
  }
  func.func @transform_6(%arg0: i32) -> (i32, i32) {
    %c0_i32 = arith.constant 0 : i32
    %c0_i32_0 = arith.constant 0 : i32
    %c0_i32_1 = arith.constant 0 : i32
    return %c0_i32, %c0_i32_0 : i32, i32
  }
  func.func @transform_7(%arg0: i32) -> (i32, i32) {
    %c0_i32 = arith.constant 0 : i32
    %c0_i32_0 = arith.constant 0 : i32
    %c0_i32_1 = arith.constant 0 : i32
    return %c0_i32, %c0_i32_0 : i32, i32
  }
  func.func @transform_8(%arg0: i32) -> (i32, i32) {
    %c0_i32 = arith.constant 0 : i32
    %c0_i32_0 = arith.constant 0 : i32
    %c0_i32_1 = arith.constant 0 : i32
    return %c0_i32, %c0_i32_0 : i32, i32
  }
  func.func @transform_9(%arg0: i32) -> (i32, i32) {
    %c0_i32 = arith.constant 0 : i32
    %c0_i32_0 = arith.constant 0 : i32
    return %arg0, %c0_i32 : i32, i32
  }
}

</mosaic_0001>

<llo_original>
// kernel: tpu_custom_call.1
$region0: #{tpu_custom_call.1}
  #allocation0 [shape = 'u32[]', space=smem, size = 0x4, offset = 0x4, fixed_abs, tag = 'smem constant byte address 0x4 - core index']
  #allocation1 [shape = 'u32[72,128]{1,0:T(1,128)}', space=vmem, size = 0x9000, scoped, tag = 'internal scratch']
  %s0 = inlined_call_operand.vmem [shape: bf16[16,16], index: 0, kind: input, shape index: {}]
  %s1 = inlined_call_operand.vmem [shape: bf16[16,256], index: 1, kind: input, shape index: {}]
  %s2 = inlined_call_operand.vmem [shape: f32[1,256], index: 2, kind: input, shape index: {}]
  %s3 = inlined_call_operand.hbm [shape: bf16[256,256], index: 3, kind: input, shape index: {}]
  %s4 = inlined_call_operand.vmem [shape: f32[1,256], index: 4, kind: input, shape index: {}]
  %s5 = inlined_call_operand.hbm [shape: bf16[256,256], index: 5, kind: input, shape index: {}]
  %s6 = inlined_call_operand.vmem [shape: f32[1,256], index: 6, kind: input, shape index: {}]
  %s7 = inlined_call_operand.vmem [shape: bf16[256,8], index: 7, kind: input, shape index: {}]
  %s8 = inlined_call_operand.vmem [shape: f32[1,8], index: 8, kind: input, shape index: {}]
  %s9 = inlined_call_operand.vmem [shape: f32[16,8], index: 9, kind: output, shape index: {}]
  %s10 = sld [smem:[#allocation0]]
  $region54: #{tpu_custom_call.1} parent=0
    _
  %s12 = ssub.s32 1, %s10
  %s13 = scalar_select 0, %s12, %s10
  $region1: #{tpu_custom_call.1} parent=0
    #allocation2 [shape = 'u8[131072]{0}', space=vmem, size = 0x20000, scoped, tag = 'input window, operand 3, single buffered']
    #allocation3 [shape = 's32[1]{0}', space=sflag, size = 0x4, scoped, tag = 'scoped memory for tpu_custom_call.1']
    #allocation4 [shape = 'u8[131072]{0}', space=vmem, size = 0x20000, scoped, tag = 'input window, operand 5, single buffered']
    #allocation5 [shape = 's32[1]{0}', space=sflag, size = 0x4, scoped, tag = 'scoped memory for tpu_custom_call.1']
    %14 = vsyncpa [#allocation3], 0
    %15 = vsyncpa [#allocation5], 0
    // Predicated region
    $region2: #{tpu_custom_call.1} parent=1 // pred_check
      _
    $region3: #{tpu_custom_call.1} parent=1 // pred_check_branch
      %17 = sbr.rel (0) target = $region5
    $region4: #{tpu_custom_call.1} parent=1 // pred_region
      _
    $region5: #{tpu_custom_call.1} parent=1 // pred_fallthru
      _
    // Predicated region
    $region6: #{tpu_custom_call.1} parent=1 // pred_check
      _
    $region7: #{tpu_custom_call.1} parent=1 // pred_check_branch
      %19 = sbr.rel (0) target = $region9
    $region8: #{tpu_custom_call.1} parent=1 // pred_region
      _
    $region9: #{tpu_custom_call.1} parent=1 // pred_fallthru
      _
    // Predicated region
    $region10: #{tpu_custom_call.1} parent=1 // pred_check
      _
    $region11: #{tpu_custom_call.1} parent=1 // pred_check_branch
      %21 = sbr.rel (0) target = $region13
    $region12: #{tpu_custom_call.1} parent=1 // pred_region
      _
    $region13: #{tpu_custom_call.1} parent=1 // pred_fallthru
      _
    // Predicated region
    $region14: #{tpu_custom_call.1} parent=1 // pred_check
      _
    $region15: #{tpu_custom_call.1} parent=1 // pred_check_branch
      %23 = sbr.rel (0) target = $region17
    $region16: #{tpu_custom_call.1} parent=1 // pred_region
      %25 = vsyncadd [#allocation3], 0
      %s26 = sshll.u32 %s3, 4
      %s27 = int_to_ptr.hbm [resolvable:$true] %s26
      %s28 = sshll.u32 [#allocation2], 4
      %s29 = int_to_ptr.vmem [resolvable:$true] %s28
      %34 = dma.hbm_to_vmem [thread:$0]  %s27, 4096, %s29, [#allocation3], 128, 128, 8
    $region17: #{tpu_custom_call.1} parent=1 // pred_fallthru
      _
    // Predicated region
    $region18: #{tpu_custom_call.1} parent=1 // pred_check
      _
    $region19: #{tpu_custom_call.1} parent=1 // pred_check_branch
      %36 = sbr.rel (0) target = $region21
    $region20: #{tpu_custom_call.1} parent=1 // pred_region
      _
    $region21: #{tpu_custom_call.1} parent=1 // pred_fallthru
      _
    // Predicated region
    $region22: #{tpu_custom_call.1} parent=1 // pred_check
      _
    $region23: #{tpu_custom_call.1} parent=1 // pred_check_branch
      %38 = sbr.rel (0) target = $region25
    $region24: #{tpu_custom_call.1} parent=1 // pred_region
      %40 = vsyncadd [#allocation5], 0
      %s41 = sshll.u32 %s5, 4
      %s42 = int_to_ptr.hbm [resolvable:$true] %s41
      %s43 = sshll.u32 [#allocation4], 4
      %s44 = int_to_ptr.vmem [resolvable:$true] %s43
      %49 = dma.hbm_to_vmem [thread:$0]  %s42, 4096, %s44, [#allocation5], 128, 128, 8
    $region25: #{tpu_custom_call.1} parent=1 // pred_fallthru
      _
    // Predicated region
    $region26: #{tpu_custom_call.1} parent=1 // pred_check
      _
    $region27: #{tpu_custom_call.1} parent=1 // pred_check_branch
      %51 = sbr.rel (0) target = $region29
    $region28: #{tpu_custom_call.1} parent=1 // pred_region
      _
    $region29: #{tpu_custom_call.1} parent=1 // pred_fallthru
      _
    // Predicated region
    $region30: #{tpu_custom_call.1} parent=1 // pred_check
      _
    $region31: #{tpu_custom_call.1} parent=1 // pred_check_branch
      %53 = sbr.rel (0) target = $region33
    $region32: #{tpu_custom_call.1} parent=1 // pred_region
      _
    $region33: #{tpu_custom_call.1} parent=1 // pred_fallthru
      _
    // Predicated region
    $region34: #{tpu_custom_call.1} parent=1 // pred_check
      _
    $region35: #{tpu_custom_call.1} parent=1 // pred_check_branch
      %55 = sbr.rel (0) target = $region37
    $region36: #{tpu_custom_call.1} parent=1 // pred_region
      _
    $region37: #{tpu_custom_call.1} parent=1 // pred_fallthru
      _
    // Predicated region
    $region38: #{tpu_custom_call.1} parent=1 // pred_check
      _
    $region39: #{tpu_custom_call.1} parent=1 // pred_check_branch
      %57 = sbr.rel (0) target = $region41
    $region40: #{tpu_custom_call.1} parent=1 // pred_region
      %59 = dma.done [#allocation3], 4096
    $region41: #{tpu_custom_call.1} parent=1 // pred_fallthru
      _
    // Predicated region
    $region42: #{tpu_custom_call.1} parent=1 // pred_check
      _
    $region43: #{tpu_custom_call.1} parent=1 // pred_check_branch
      %61 = sbr.rel (0) target = $region45
    $region44: #{tpu_custom_call.1} parent=1 // pred_region
      %63 = dma.done [#allocation5], 4096
    $region45: #{tpu_custom_call.1} parent=1 // pred_fallthru
      _
    %v65 = vld [vmem:[%s0] sm:$0xf]
    %v66 = vld [vmem:[%s0 + $0x4] sm:$0xf]
    %v67 = vld [vmem:[%s1] sm:$0xff]
    %v68 = vld [vmem:[%s1 + $0x8] sm:$0xff]
    %v69 = vld [vmem:[%s2] sm:$0x3]
    %v71 = vperm.slane %v69, 0
    %v72 = vperm.slane %v69, 1
    %v77 = vunpack.c.l.b16 %v65
    %v78 = vunpack.c.l.b16 %v66
    %v79 = vpack.c.b16 %v78, %v77
    %v82 = vunpack.c.l.b16 %v67
    %v83 = vunpack.c.h.b16 %v67
    %v84 = vunpack.c.l.b16 %v68
    %v85 = vunpack.c.h.b16 %v68
    %v86 = vpack.c.b16 %v84, %v82
    %v87 = vpack.c.b16 %v85, %v83
    %vm90 = vcmask 130048
    %v92 = vsel %vm90, %v79, 0
    %94 = vmatpush.bf16.msra.mxu0 0
    %95 = vmatpush.bf16.msra.mxu0 0
    %96 = vmatpush.bf16.msra.mxu0 0
    %97 = vmatpush.bf16.msra.mxu0 0
    %98 = vmatpush.bf16.msra.mxu0 0
    %99 = vmatpush.bf16.msra.mxu0 0
    %100 = vmatpush.bf16.msra.mxu0 0
    %101 = vmatpush.bf16.msra.mxu0 %v86
    %102 = vmatmul.bf16.gmra.mxu0 %v92
    %v103 = vpop.f32.mrf.mxu0
    %v104 = vadd.f32 %v71, %v103
    %v105 = vpop.f32.mrf.mxu0
    %v106 = vadd.f32 %v71, %v105
    %107 = vdwg.mxu0
    %108 = vmatpush.bf16.msra.mxu0 0
    %109 = vmatpush.bf16.msra.mxu0 0
    %110 = vmatpush.bf16.msra.mxu0 0
    %111 = vmatpush.bf16.msra.mxu0 0
    %112 = vmatpush.bf16.msra.mxu0 0
    %113 = vmatpush.bf16.msra.mxu0 0
    %114 = vmatpush.bf16.msra.mxu0 0
    %115 = vmatpush.bf16.msra.mxu0 %v87
    %116 = vmatmul.bf16.gmra.mxu0 %v92
    %v117 = vpop.f32.mrf.mxu0
    %v118 = vadd.f32 %v72, %v117
    %v119 = vpop.f32.mrf.mxu0
    %v120 = vadd.f32 %v72, %v119
    %121 = vdwg.mxu0
    %v122 = vmax.f32 %v104, 0.0
    %v123 = vmax.f32 %v118, 0.0
    %v124 = vmax.f32 %v106, 0.0
    %v125 = vmax.f32 %v120, 0.0
    %v126 = vpack.c.bf16 %v124, %v122
    %v127 = vpack.c.bf16 %v125, %v123
    %v128 = vld [vmem:[#allocation2] sm:$0xff]
    %v129 = vld [vmem:[#allocation2 + $0x8] sm:$0xff]
    %v130 = vld [vmem:[#allocation2 + $0x10] sm:$0xff]
    %v131 = vld [vmem:[#allocation2 + $0x18] sm:$0xff]
    %v132 = vld [vmem:[#allocation2 + $0x20] sm:$0xff]
    %v133 = vld [vmem:[#allocation2 + $0x28] sm:$0xff]
    %v134 = vld [vmem:[#allocation2 + $0x30] sm:$0xff]
    %v135 = vld [vmem:[#allocation2 + $0x38] sm:$0xff]
    %v136 = vld [vmem:[#allocation2 + $0x40] sm:$0xff]
    %v137 = vld [vmem:[#allocation2 + $0x48] sm:$0xff]
    %v138 = vld [vmem:[#allocation2 + $0x50] sm:$0xff]
    %v139 = vld [vmem:[#allocation2 + $0x58] sm:$0xff]
    %v140 = vld [vmem:[#allocation2 + $0x60] sm:$0xff]
    %v141 = vld [vmem:[#allocation2 + $0x68] sm:$0xff]
    %v142 = vld [vmem:[#allocation2 + $0x70] sm:$0xff]
    %v143 = vld [vmem:[#allocation2 + $0x78] sm:$0xff]
    %v144 = vld [vmem:[#allocation2 + $0x80] sm:$0xff]
    %v145 = vld [vmem:[#allocation2 + $0x88] sm:$0xff]
    %v146 = vld [vmem:[#allocation2 + $0x90] sm:$0xff]
    %v147 = vld [vmem:[#allocation2 + $0x98] sm:$0xff]
    %v148 = vld [vmem:[#allocation2 + $0xa0] sm:$0xff]
    %v149 = vld [vmem:[#allocation2 + $0xa8] sm:$0xff]
    %v150 = vld [vmem:[#allocation2 + $0xb0] sm:$0xff]
    %v151 = vld [vmem:[#allocation2 + $0xb8] sm:$0xff]
    %v152 = vld [vmem:[#allocation2 + $0xc0] sm:$0xff]
    %v153 = vld [vmem:[#allocation2 + $0xc8] sm:$0xff]
    %v154 = vld [vmem:[#allocation2 + $0xd0] sm:$0xff]
    %v155 = vld [vmem:[#allocation2 + $0xd8] sm:$0xff]
    %v156 = vld [vmem:[#allocation2 + $0xe0] sm:$0xff]
    %v157 = vld [vmem:[#allocation2 + $0xe8] sm:$0xff]
    %v158 = vld [vmem:[#allocation2 + $0xf0] sm:$0xff]
    %v159 = vld [vmem:[#allocation2 + $0xf8] sm:$0xff]
    %v160 = vld [vmem:[%s4] sm:$0x3]
    %v162 = vperm.slane %v160, 0
    %v163 = vperm.slane %v160, 1
    %v198 = vunpack.c.l.b16 %v128
    %v199 = vunpack.c.h.b16 %v128
    %v200 = vunpack.c.l.b16 %v129
    %v201 = vunpack.c.h.b16 %v129
    %v202 = vunpack.c.l.b16 %v130
    %v203 = vunpack.c.h.b16 %v130
    %v204 = vunpack.c.l.b16 %v131
    %v205 = vunpack.c.h.b16 %v131
    %v206 = vunpack.c.l.b16 %v132
    %v207 = vunpack.c.h.b16 %v132
    %v208 = vunpack.c.l.b16 %v133
    %v209 = vunpack.c.h.b16 %v133
    %v210 = vunpack.c.l.b16 %v134
    %v211 = vunpack.c.h.b16 %v134
    %v212 = vunpack.c.l.b16 %v135
    %v213 = vunpack.c.h.b16 %v135
    %v214 = vunpack.c.l.b16 %v136
    %v215 = vunpack.c.h.b16 %v136
    %v216 = vunpack.c.l.b16 %v137
    %v217 = vunpack.c.h.b16 %v137
    %v218 = vunpack.c.l.b16 %v138
    %v219 = vunpack.c.h.b16 %v138
    %v220 = vunpack.c.l.b16 %v139
    %v221 = vunpack.c.h.b16 %v139
    %v222 = vunpack.c.l.b16 %v140
    %v223 = vunpack.c.h.b16 %v140
    %v224 = vunpack.c.l.b16 %v141
    %v225 = vunpack.c.h.b16 %v141
    %v226 = vunpack.c.l.b16 %v142
    %v227 = vunpack.c.h.b16 %v142
    %v228 = vunpack.c.l.b16 %v143
    %v229 = vunpack.c.h.b16 %v143
    %v230 = vunpack.c.l.b16 %v144
    %v231 = vunpack.c.h.b16 %v144
    %v232 = vunpack.c.l.b16 %v145
    %v233 = vunpack.c.h.b16 %v145
    %v234 = vunpack.c.l.b16 %v146
    %v235 = vunpack.c.h.b16 %v146
    %v236 = vunpack.c.l.b16 %v147
    %v237 = vunpack.c.h.b16 %v147
    %v238 = vunpack.c.l.b16 %v148
    %v239 = vunpack.c.h.b16 %v148
    %v240 = vunpack.c.l.b16 %v149
    %v241 = vunpack.c.h.b16 %v149
    %v242 = vunpack.c.l.b16 %v150
    %v243 = vunpack.c.h.b16 %v150
    %v244 = vunpack.c.l.b16 %v151
    %v245 = vunpack.c.h.b16 %v151
    %v246 = vunpack.c.l.b16 %v152
    %v247 = vunpack.c.h.b16 %v152
    %v248 = vunpack.c.l.b16 %v153
    %v249 = vunpack.c.h.b16 %v153
    %v250 = vunpack.c.l.b16 %v154
    %v251 = vunpack.c.h.b16 %v154
    %v252 = vunpack.c.l.b16 %v155
    %v253 = vunpack.c.h.b16 %v155
    %v254 = vunpack.c.l.b16 %v156
    %v255 = vunpack.c.h.b16 %v156
    %v256 = vunpack.c.l.b16 %v157
    %v257 = vunpack.c.h.b16 %v157
    %v258 = vunpack.c.l.b16 %v158
    %v259 = vunpack.c.h.b16 %v158
    %v260 = vunpack.c.l.b16 %v159
    %v261 = vunpack.c.h.b16 %v159
    %v262 = vpack.c.b16 %v200, %v198
    %v263 = vpack.c.b16 %v201, %v199
    %v264 = vpack.c.b16 %v204, %v202
    %v265 = vpack.c.b16 %v205, %v203
    %v266 = vpack.c.b16 %v208, %v206
    %v267 = vpack.c.b16 %v209, %v207
    %v268 = vpack.c.b16 %v212, %v210
    %v269 = vpack.c.b16 %v213, %v211
    %v270 = vpack.c.b16 %v216, %v214
    %v271 = vpack.c.b16 %v217, %v215
    %v272 = vpack.c.b16 %v220, %v218
    %v273 = vpack.c.b16 %v221, %v219
    %v274 = vpack.c.b16 %v224, %v222
    %v275 = vpack.c.b16 %v225, %v223
    %v276 = vpack.c.b16 %v228, %v226
    %v277 = vpack.c.b16 %v229, %v227
    %v278 = vpack.c.b16 %v232, %v230
    %v279 = vpack.c.b16 %v233, %v231
    %v280 = vpack.c.b16 %v236, %v234
    %v281 = vpack.c.b16 %v237, %v235
    %v282 = vpack.c.b16 %v240, %v238
    %v283 = vpack.c.b16 %v241, %v239
    %v284 = vpack.c.b16 %v244, %v242
    %v285 = vpack.c.b16 %v245, %v243
    %v286 = vpack.c.b16 %v248, %v246
    %v287 = vpack.c.b16 %v249, %v247
    %v288 = vpack.c.b16 %v252, %v250
    %v289 = vpack.c.b16 %v253, %v251
    %v290 = vpack.c.b16 %v256, %v254
    %v291 = vpack.c.b16 %v257, %v255
    %v292 = vpack.c.b16 %v260, %v258
    %v293 = vpack.c.b16 %v261, %v259
    %326 = vmatpush.bf16.msra.mxu0 %v276
    %327 = vmatpush.bf16.msra.mxu0 %v274
    %328 = vmatpush.bf16.msra.mxu0 %v272
    %329 = vmatpush.bf16.msra.mxu0 %v270
    %330 = vmatpush.bf16.msra.mxu0 %v268
    %331 = vmatpush.bf16.msra.mxu0 %v266
    %332 = vmatpush.bf16.msra.mxu0 %v264
    %333 = vmatpush.bf16.msra.mxu0 %v262
    %334 = vmatmul.bf16.gmra.mxu0 %v126
    %v335 = vpop.f32.mrf.mxu0
    %v336 = vadd.f32 %v162, %v335
    %v337 = vpop.f32.mrf.mxu0
    %v338 = vadd.f32 %v162, %v337
    %339 = vdwg.mxu0
    %340 = vmatpush.bf16.msra.mxu0 %v292
    %341 = vmatpush.bf16.msra.mxu0 %v290
    %342 = vmatpush.bf16.msra.mxu0 %v288
    %343 = vmatpush.bf16.msra.mxu0 %v286
    %344 = vmatpush.bf16.msra.mxu0 %v284
    %345 = vmatpush.bf16.msra.mxu0 %v282
    %346 = vmatpush.bf16.msra.mxu0 %v280
    %347 = vmatpush.bf16.msra.mxu0 %v278
    %348 = vmatmul.bf16.gmra.mxu0 %v127
    %v349 = vpop.f32.mrf.mxu0
    %v350 = vadd.f32 %v336, %v349
    %v351 = vpop.f32.mrf.mxu0
    %v352 = vadd.f32 %v338, %v351
    %353 = vdwg.mxu0
    %354 = vmatpush.bf16.msra.mxu0 %v277
    %355 = vmatpush.bf16.msra.mxu0 %v275
    %356 = vmatpush.bf16.msra.mxu0 %v273
    %357 = vmatpush.bf16.msra.mxu0 %v271
    %358 = vmatpush.bf16.msra.mxu0 %v269
    %359 = vmatpush.bf16.msra.mxu0 %v267
    %360 = vmatpush.bf16.msra.mxu0 %v265
    %361 = vmatpush.bf16.msra.mxu0 %v263
    %362 = vmatmul.bf16.gmra.mxu0 %v126
    %v363 = vpop.f32.mrf.mxu0
    %v364 = vadd.f32 %v163, %v363
    %v365 = vpop.f32.mrf.mxu0
    %v366 = vadd.f32 %v163, %v365
    %367 = vdwg.mxu0
    %368 = vmatpush.bf16.msra.mxu0 %v293
    %369 = vmatpush.bf16.msra.mxu0 %v291
    %370 = vmatpush.bf16.msra.mxu0 %v289
    %371 = vmatpush.bf16.msra.mxu0 %v287
    %372 = vmatpush.bf16.msra.mxu0 %v285
    %373 = vmatpush.bf16.msra.mxu0 %v283
    %374 = vmatpush.bf16.msra.mxu0 %v281
    %375 = vmatpush.bf16.msra.mxu0 %v279
    %376 = vmatmul.bf16.gmra.mxu0 %v127
    %v377 = vpop.f32.mrf.mxu0
    %v378 = vadd.f32 %v364, %v377
    %v379 = vpop.f32.mrf.mxu0
    %v380 = vadd.f32 %v366, %v379
    %381 = vdwg.mxu0
    %v382 = vmax.f32 %v350, 0.0
    %v383 = vmax.f32 %v378, 0.0
    %v384 = vmax.f32 %v352, 0.0
    %v385 = vmax.f32 %v380, 0.0
    %v386 = vpack.c.bf16 %v384, %v382
    %v387 = vpack.c.bf16 %v385, %v383
    %v388 = vld [vmem:[#allocation4] sm:$0xff]
    %v389 = vld [vmem:[#allocation4 + $0x8] sm:$0xff]
    %v390 = vld [vmem:[#allocation4 + $0x10] sm:$0xff]
    %v391 = vld [vmem:[#allocation4 + $0x18] sm:$0xff]
    %v392 = vld [vmem:[#allocation4 + $0x20] sm:$0xff]
    %v393 = vld [vmem:[#allocation4 + $0x28] sm:$0xff]
    %v394 = vld [vmem:[#allocation4 + $0x30] sm:$0xff]
    %v395 = vld [vmem:[#allocation4 + $0x38] sm:$0xff]
    %v396 = vld [vmem:[#allocation4 + $0x40] sm:$0xff]
    %v397 = vld [vmem:[#allocation4 + $0x48] sm:$0xff]
    %v398 = vld [vmem:[#allocation4 + $0x50] sm:$0xff]
    %v399 = vld [vmem:[#allocation4 + $0x58] sm:$0xff]
    %v400 = vld [vmem:[#allocation4 + $0x60] sm:$0xff]
    %v401 = vld [vmem:[#allocation4 + $0x68] sm:$0xff]
    %v402 = vld [vmem:[#allocation4 + $0x70] sm:$0xff]
    %v403 = vld [vmem:[#allocation4 + $0x78] sm:$0xff]
    %v404 = vld [vmem:[#allocation4 + $0x80] sm:$0xff]
    %v405 = vld [vmem:[#allocation4 + $0x88] sm:$0xff]
    %v406 = vld [vmem:[#allocation4 + $0x90] sm:$0xff]
    %v407 = vld [vmem:[#allocation4 + $0x98] sm:$0xff]
    %v408 = vld [vmem:[#allocation4 + $0xa0] sm:$0xff]
    %v409 = vld [vmem:[#allocation4 + $0xa8] sm:$0xff]
    %v410 = vld [vmem:[#allocation4 + $0xb0] sm:$0xff]
    %v411 = vld [vmem:[#allocation4 + $0xb8] sm:$0xff]
    %v412 = vld [vmem:[#allocation4 + $0xc0] sm:$0xff]
    %v413 = vld [vmem:[#allocation4 + $0xc8] sm:$0xff]
    %v414 = vld [vmem:[#allocation4 + $0xd0] sm:$0xff]
    %v415 = vld [vmem:[#allocation4 + $0xd8] sm:$0xff]
    %v416 = vld [vmem:[#allocation4 + $0xe0] sm:$0xff]
    %v417 = vld [vmem:[#allocation4 + $0xe8] sm:$0xff]
    %v418 = vld [vmem:[#allocation4 + $0xf0] sm:$0xff]
    %v419 = vld [vmem:[#allocation4 + $0xf8] sm:$0xff]
    %v420 = vld [vmem:[%s6] sm:$0x3]
    %v422 = vperm.slane %v420, 0
    %v423 = vperm.slane %v420, 1
    %v458 = vunpack.c.l.b16 %v388
    %v459 = vunpack.c.h.b16 %v388
    %v460 = vunpack.c.l.b16 %v389
    %v461 = vunpack.c.h.b16 %v389
    %v462 = vunpack.c.l.b16 %v390
    %v463 = vunpack.c.h.b16 %v390
    %v464 = vunpack.c.l.b16 %v391
    %v465 = vunpack.c.h.b16 %v391
    %v466 = vunpack.c.l.b16 %v392
    %v467 = vunpack.c.h.b16 %v392
    %v468 = vunpack.c.l.b16 %v393
    %v469 = vunpack.c.h.b16 %v393
    %v470 = vunpack.c.l.b16 %v394
    %v471 = vunpack.c.h.b16 %v394
    %v472 = vunpack.c.l.b16 %v395
    %v473 = vunpack.c.h.b16 %v395
    %v474 = vunpack.c.l.b16 %v396
    %v475 = vunpack.c.h.b16 %v396
    %v476 = vunpack.c.l.b16 %v397
    %v477 = vunpack.c.h.b16 %v397
    %v478 = vunpack.c.l.b16 %v398
    %v479 = vunpack.c.h.b16 %v398
    %v480 = vunpack.c.l.b16 %v399
    %v481 = vunpack.c.h.b16 %v399
    %v482 = vunpack.c.l.b16 %v400
    %v483 = vunpack.c.h.b16 %v400
    %v484 = vunpack.c.l.b16 %v401
    %v485 = vunpack.c.h.b16 %v401
    %v486 = vunpack.c.l.b16 %v402
    %v487 = vunpack.c.h.b16 %v402
    %v488 = vunpack.c.l.b16 %v403
    %v489 = vunpack.c.h.b16 %v403
    %v490 = vunpack.c.l.b16 %v404
    %v491 = vunpack.c.h.b16 %v404
    %v492 = vunpack.c.l.b16 %v405
    %v493 = vunpack.c.h.b16 %v405
    %v494 = vunpack.c.l.b16 %v406
    %v495 = vunpack.c.h.b16 %v406
    %v496 = vunpack.c.l.b16 %v407
    %v497 = vunpack.c.h.b16 %v407
    %v498 = vunpack.c.l.b16 %v408
    %v499 = vunpack.c.h.b16 %v408
    %v500 = vunpack.c.l.b16 %v409
    %v501 = vunpack.c.h.b16 %v409
    %v502 = vunpack.c.l.b16 %v410
    %v503 = vunpack.c.h.b16 %v410
    %v504 = vunpack.c.l.b16 %v411
    %v505 = vunpack.c.h.b16 %v411
    %v506 = vunpack.c.l.b16 %v412
    %v507 = vunpack.c.h.b16 %v412
    %v508 = vunpack.c.l.b16 %v413
    %v509 = vunpack.c.h.b16 %v413
    %v510 = vunpack.c.l.b16 %v414
    %v511 = vunpack.c.h.b16 %v414
    %v512 = vunpack.c.l.b16 %v415
    %v513 = vunpack.c.h.b16 %v415
    %v514 = vunpack.c.l.b16 %v416
    %v515 = vunpack.c.h.b16 %v416
    %v516 = vunpack.c.l.b16 %v417
    %v517 = vunpack.c.h.b16 %v417
    %v518 = vunpack.c.l.b16 %v418
    %v519 = vunpack.c.h.b16 %v418
    %v520 = vunpack.c.l.b16 %v419
    %v521 = vunpack.c.h.b16 %v419
    %v522 = vpack.c.b16 %v460, %v458
    %v523 = vpack.c.b16 %v461, %v459
    %v524 = vpack.c.b16 %v464, %v462
    %v525 = vpack.c.b16 %v465, %v463
    %v526 = vpack.c.b16 %v468, %v466
    %v527 = vpack.c.b16 %v469, %v467
    %v528 = vpack.c.b16 %v472, %v470
    %v529 = vpack.c.b16 %v473, %v471
    %v530 = vpack.c.b16 %v476, %v474
    %v531 = vpack.c.b16 %v477, %v475
    %v532 = vpack.c.b16 %v480, %v478
    %v533 = vpack.c.b16 %v481, %v479
    %v534 = vpack.c.b16 %v484, %v482
    %v535 = vpack.c.b16 %v485, %v483
    %v536 = vpack.c.b16 %v488, %v486
    %v537 = vpack.c.b16 %v489, %v487
    %v538 = vpack.c.b16 %v492, %v490
    %v539 = vpack.c.b16 %v493, %v491
    %v540 = vpack.c.b16 %v496, %v494
    %v541 = vpack.c.b16 %v497, %v495
    %v542 = vpack.c.b16 %v500, %v498
    %v543 = vpack.c.b16 %v501, %v499
    %v544 = vpack.c.b16 %v504, %v502
    %v545 = vpack.c.b16 %v505, %v503
    %v546 = vpack.c.b16 %v508, %v506
    %v547 = vpack.c.b16 %v509, %v507
    %v548 = vpack.c.b16 %v512, %v510
    %v549 = vpack.c.b16 %v513, %v511
    %v550 = vpack.c.b16 %v516, %v514
    %v551 = vpack.c.b16 %v517, %v515
    %v552 = vpack.c.b16 %v520, %v518
    %v553 = vpack.c.b16 %v521, %v519
    %586 = vmatpush.bf16.msra.mxu0 %v536
    %587 = vmatpush.bf16.msra.mxu0 %v534
    %588 = vmatpush.bf16.msra.mxu0 %v532
    %589 = vmatpush.bf16.msra.mxu0 %v530
    %590 = vmatpush.bf16.msra.mxu0 %v528
    %591 = vmatpush.bf16.msra.mxu0 %v526
    %592 = vmatpush.bf16.msra.mxu0 %v524
    %593 = vmatpush.bf16.msra.mxu0 %v522
    %594 = vmatmul.bf16.gmra.mxu0 %v386
    %v595 = vpop.f32.mrf.mxu0
    %v596 = vadd.f32 %v422, %v595
    %v597 = vpop.f32.mrf.mxu0
    %v598 = vadd.f32 %v422, %v597
    %599 = vdwg.mxu0
    %600 = vmatpush.bf16.msra.mxu0 %v552
    %601 = vmatpush.bf16.msra.mxu0 %v550
    %602 = vmatpush.bf16.msra.mxu0 %v548
    %603 = vmatpush.bf16.msra.mxu0 %v546
    %604 = vmatpush.bf16.msra.mxu0 %v544
    %605 = vmatpush.bf16.msra.mxu0 %v542
    %606 = vmatpush.bf16.msra.mxu0 %v540
    %607 = vmatpush.bf16.msra.mxu0 %v538
    %608 = vmatmul.bf16.gmra.mxu0 %v387
    %v609 = vpop.f32.mrf.mxu0
    %v610 = vadd.f32 %v596, %v609
    %v611 = vpop.f32.mrf.mxu0
    %v612 = vadd.f32 %v598, %v611
    %613 = vdwg.mxu0
    %614 = vmatpush.bf16.msra.mxu0 %v537
    %615 = vmatpush.bf16.msra.mxu0 %v535
    %616 = vmatpush.bf16.msra.mxu0 %v533
    %617 = vmatpush.bf16.msra.mxu0 %v531
    %618 = vmatpush.bf16.msra.mxu0 %v529
    %619 = vmatpush.bf16.msra.mxu0 %v527
    %620 = vmatpush.bf16.msra.mxu0 %v525
    %621 = vmatpush.bf16.msra.mxu0 %v523
    %622 = vmatmul.bf16.gmra.mxu0 %v386
    %v623 = vpop.f32.mrf.mxu0
    %v624 = vadd.f32 %v423, %v623
    %v625 = vpop.f32.mrf.mxu0
    %v626 = vadd.f32 %v423, %v625
    %627 = vdwg.mxu0
    %628 = vmatpush.bf16.msra.mxu0 %v553
    %629 = vmatpush.bf16.msra.mxu0 %v551
    %630 = vmatpush.bf16.msra.mxu0 %v549
    %631 = vmatpush.bf16.msra.mxu0 %v547
    %632 = vmatpush.bf16.msra.mxu0 %v545
    %633 = vmatpush.bf16.msra.mxu0 %v543
    %634 = vmatpush.bf16.msra.mxu0 %v541
    %635 = vmatpush.bf16.msra.mxu0 %v539
    %636 = vmatmul.bf16.gmra.mxu0 %v387
    %v637 = vpop.f32.mrf.mxu0
    %v638 = vadd.f32 %v624, %v637
    %v639 = vpop.f32.mrf.mxu0
    %v640 = vadd.f32 %v626, %v639
    %641 = vdwg.mxu0
    %v642 = vmax.f32 %v610, 0.0
    %v643 = vmax.f32 %v638, 0.0
    %v644 = vmax.f32 %v612, 0.0
    %v645 = vmax.f32 %v640, 0.0
    %v646 = vpack.c.bf16 %v644, %v642
    %v647 = vpack.c.bf16 %v645, %v643
    %v648 = vld [vmem:[%s7] sm:$0xf]
    %v649 = vld [vmem:[%s7 + $0x4] sm:$0xf]
    %v650 = vld [vmem:[%s7 + $0x8] sm:$0xf]
    %v651 = vld [vmem:[%s7 + $0xc] sm:$0xf]
    %v652 = vld [vmem:[%s7 + $0x10] sm:$0xf]
    %v653 = vld [vmem:[%s7 + $0x14] sm:$0xf]
    %v654 = vld [vmem:[%s7 + $0x18] sm:$0xf]
    %v655 = vld [vmem:[%s7 + $0x1c] sm:$0xf]
    %v656 = vld [vmem:[%s7 + $0x20] sm:$0xf]
    %v657 = vld [vmem:[%s7 + $0x24] sm:$0xf]
    %v658 = vld [vmem:[%s7 + $0x28] sm:$0xf]
    %v659 = vld [vmem:[%s7 + $0x2c] sm:$0xf]
    %v660 = vld [vmem:[%s7 + $0x30] sm:$0xf]
    %v661 = vld [vmem:[%s7 + $0x34] sm:$0xf]
    %v662 = vld [vmem:[%s7 + $0x38] sm:$0xf]
    %v663 = vld [vmem:[%s7 + $0x3c] sm:$0xf]
    %v664 = vld [vmem:[%s7 + $0x40] sm:$0xf]
    %v665 = vld [vmem:[%s7 + $0x44] sm:$0xf]
    %v666 = vld [vmem:[%s7 + $0x48] sm:$0xf]
    %v667 = vld [vmem:[%s7 + $0x4c] sm:$0xf]
    %v668 = vld [vmem:[%s7 + $0x50] sm:$0xf]
    %v669 = vld [vmem:[%s7 + $0x54] sm:$0xf]
    %v670 = vld [vmem:[%s7 + $0x58] sm:$0xf]
    %v671 = vld [vmem:[%s7 + $0x5c] sm:$0xf]
    %v672 = vld [vmem:[%s7 + $0x60] sm:$0xf]
    %v673 = vld [vmem:[%s7 + $0x64] sm:$0xf]
    %v674 = vld [vmem:[%s7 + $0x68] sm:$0xf]
    %v675 = vld [vmem:[%s7 + $0x6c] sm:$0xf]
    %v676 = vld [vmem:[%s7 + $0x70] sm:$0xf]
    %v677 = vld [vmem:[%s7 + $0x74] sm:$0xf]
    %v678 = vld [vmem:[%s7 + $0x78] sm:$0xf]
    %v679 = vld [vmem:[%s7 + $0x7c] sm:$0xf]
    %v680 = vld [vmem:[%s8] sm:$0x1]
    %v682 = vperm.slane %v680, 0
    %v716 = vunpack.c.l.b16 %v648
    %v717 = vunpack.c.l.b16 %v649
    %v718 = vunpack.c.l.b16 %v650
    %v719 = vunpack.c.l.b16 %v651
    %v720 = vunpack.c.l.b16 %v652
    %v721 = vunpack.c.l.b16 %v653
    %v722 = vunpack.c.l.b16 %v654
    %v723 = vunpack.c.l.b16 %v655
    %v724 = vunpack.c.l.b16 %v656
    %v725 = vunpack.c.l.b16 %v657
    %v726 = vunpack.c.l.b16 %v658
    %v727 = vunpack.c.l.b16 %v659
    %v728 = vunpack.c.l.b16 %v660
    %v729 = vunpack.c.l.b16 %v661
    %v730 = vunpack.c.l.b16 %v662
    %v731 = vunpack.c.l.b16 %v663
    %v732 = vunpack.c.l.b16 %v664
    %v733 = vunpack.c.l.b16 %v665
    %v734 = vunpack.c.l.b16 %v666
    %v735 = vunpack.c.l.b16 %v667
    %v736 = vunpack.c.l.b16 %v668
    %v737 = vunpack.c.l.b16 %v669
    %v738 = vunpack.c.l.b16 %v670
    %v739 = vunpack.c.l.b16 %v671
    %v740 = vunpack.c.l.b16 %v672
    %v741 = vunpack.c.l.b16 %v673
    %v742 = vunpack.c.l.b16 %v674
    %v743 = vunpack.c.l.b16 %v675
    %v744 = vunpack.c.l.b16 %v676
    %v745 = vunpack.c.l.b16 %v677
    %v746 = vunpack.c.l.b16 %v678
    %v747 = vunpack.c.l.b16 %v679
    %v748 = vpack.c.b16 %v717, %v716
    %v749 = vpack.c.b16 %v719, %v718
    %v750 = vpack.c.b16 %v721, %v720
    %v751 = vpack.c.b16 %v723, %v722
    %v752 = vpack.c.b16 %v725, %v724
    %v753 = vpack.c.b16 %v727, %v726
    %v754 = vpack.c.b16 %v729, %v728
    %v755 = vpack.c.b16 %v731, %v730
    %v756 = vpack.c.b16 %v733, %v732
    %v757 = vpack.c.b16 %v735, %v734
    %v758 = vpack.c.b16 %v737, %v736
    %v759 = vpack.c.b16 %v739, %v738
    %v760 = vpack.c.b16 %v741, %v740
    %v761 = vpack.c.b16 %v743, %v742
    %v762 = vpack.c.b16 %v745, %v744
    %v763 = vpack.c.b16 %v747, %v746
    %780 = vmatpush.bf16.msra.mxu0 %v755
    %781 = vmatpush.bf16.msra.mxu0 %v754
    %782 = vmatpush.bf16.msra.mxu0 %v753
    %783 = vmatpush.bf16.msra.mxu0 %v752
    %784 = vmatpush.bf16.msra.mxu0 %v751
    %785 = vmatpush.bf16.msra.mxu0 %v750
    %786 = vmatpush.bf16.msra.mxu0 %v749
    %787 = vmatpush.bf16.msra.mxu0 %v748
    %788 = vmatmul.bf16.gmra.mxu0 %v646
    %v789 = vpop.f32.mrf.mxu0
    %v790 = vadd.f32 %v682, %v789
    %v791 = vpop.f32.mrf.mxu0
    %v792 = vadd.f32 %v682, %v791
    %793 = vdwg.mxu0
    %794 = vmatpush.bf16.msra.mxu0 %v763
    %795 = vmatpush.bf16.msra.mxu0 %v762
    %796 = vmatpush.bf16.msra.mxu0 %v761
    %797 = vmatpush.bf16.msra.mxu0 %v760
    %798 = vmatpush.bf16.msra.mxu0 %v759
    %799 = vmatpush.bf16.msra.mxu0 %v758
    %800 = vmatpush.bf16.msra.mxu0 %v757
    %801 = vmatpush.bf16.msra.mxu0 %v756
    %802 = vmatmul.bf16.gmra.mxu0 %v647
    %v803 = vpop.f32.mrf.mxu0
    %v804 = vadd.f32 %v790, %v803
    %v805 = vpop.f32.mrf.mxu0
    %v806 = vadd.f32 %v792, %v805
    %807 = vdwg.mxu0
    %v808 = vtanh.pop %v804
    %v809 = vtanh.pop %v806
    %vm810 = vcmask 64512
    %811 = vst.msk [vmem:[%s9] sm:$0xff] %vm810, %v808
    %812 = vst.msk [vmem:[%s9 + $0x8] sm:$0xff] %vm810, %v809
    // Predicated region
    $region46: #{tpu_custom_call.1} parent=1 // pred_check
      _
    $region47: #{tpu_custom_call.1} parent=1 // pred_check_branch
      %814 = sbr.rel (0) target = $region49
    $region48: #{tpu_custom_call.1} parent=1 // pred_region
      _
    $region49: #{tpu_custom_call.1} parent=1 // pred_fallthru
      _
    // Predicated region
    $region50: #{tpu_custom_call.1} parent=1 // pred_check
      _
    $region51: #{tpu_custom_call.1} parent=1 // pred_check_branch
      %816 = sbr.rel (0) target = $region53
    $region52: #{tpu_custom_call.1} parent=1 // pred_region
      _
    $region53: #{tpu_custom_call.1} parent=1 // pred_fallthru
      _
    %817 = vsyncpa [#allocation3], 1
    %818 = vsyncpa [#allocation5], 1

</llo_original>
